<compile_context>
chip_gen: v7x
topology: tpu7x:2x2x1
jax: 0.10.0
libtpu: 0.0.40
codegen_flags: <defaults>
</compile_context>

<pallas_src>
import functools

import jax
import jax.numpy as jnp
from jax.experimental import pallas as pl
from jax.experimental.pallas import tpu as pltpu

_BN_EPS = 1e-5
_LANE = 128


def _round_up(x, m):
    return (x + m - 1) // m * m


def _vmem_capacity_bytes():
    try:
        cap = int(pltpu.get_tpu_info().vmem_capacity_bytes)
        if cap > 0:
            return cap
    except Exception:
        pass
    return 64 * 1024 * 1024  # conservative fallback: v7x per-TensorCore VMEM


def _num_tensorcores():
    # Best-effort query; default to 1 (v5e/v6e) so tiles are never shrunk for a
    # second TensorCore that does not exist.
    try:
        info = pltpu.get_tpu_info()
        for attr in ("num_cores", "num_tensorcores", "tensorcores_per_chip",
                     "cores_per_chip"):
            v = getattr(info, attr, None)
            if v:
                return int(v)
    except Exception:
        pass
    return 1


def _choose_tiles(n, c_in, c_out_p, budget, num_cores):
    """Return (tn, tk, c_in_p, x_in_f32).

    tk == c_in  -> full-K path (single reduction step, no accumulation pass).
    tk <  c_in  -> K-tiled path (accumulate into the resident f32 output block).
    """

    def usage(tn, tk, x_bytes, w_bufs=2):
        return (2 * n * tk * x_bytes      # x tile, double-buffered
                + w_bufs * tk * tn * 2    # bf16 W_T tile
                + 2 * n * tn * 4          # f32 output tile (doubles as accumulator)
                + 4 * 8 * tn * 4)         # gamma/beta tiles (sublane padded)

    # Only concede half-size feature tiles when a 2nd TensorCore exists (v7x).
    max_tn = c_out_p
    if num_cores >= 2 and c_out_p >= 2 * _LANE:
        max_tn = c_out_p // 2
    tn_candidates = [t for t in (2048, 1024, 512, 256, 128)
                     if t <= max_tn and c_out_p % t == 0]
    if c_out_p <= max_tn and c_out_p not in tn_candidates:
        tn_candidates.insert(0, c_out_p)
    if not tn_candidates:
        tn_candidates = [min(_LANE, c_out_p)]

    # Pass 1: any full-K configuration beats K-tiling (no per-step output
    # read-modify-write, x is fetched once because its block index is constant).
    for tn in tn_candidates:
        if usage(tn, c_in, 2) <= budget:
            num_j = c_out_p // tn
            # Skip the wrapper-side x bf16 cast (cast in-kernel instead) when x
            # is not re-streamed across many feature tiles and f32 x still fits.
            x_in_f32 = num_j <= 3 and usage(tn, c_in, 4) <= budget
            return tn, c_in, c_in, x_in_f32

    # Pass 2: K-tiled with a 3-deep W_T pipeline (smaller per-step DMAs).
    for tn in tn_candidates:
        for tk in (2048, 1024, 512, 256, 128):
            if tk >= c_in:
                continue
            if usage(tn, tk, 2, w_bufs=3) <= budget:
                return tn, tk, _round_up(c_in, tk), False

    # Last resort: smallest tiles, re-checked against the budget.
    tn = tn_candidates[-1]
    tk = min(c_in, _LANE)
    c_in_p = c_in if tk == c_in else _round_up(c_in, tk)
    if usage(tn, tk, 2, w_bufs=3) > budget:
        # TODO(synk): batch (N) tiling with a sum / sum-of-squares BatchNorm is
        # required here (the [N, tn] f32 output block alone exceeds VMEM).
        raise ValueError(
            f"LinearBnAct tiles do not fit VMEM (N={n}, C_in={c_in}, "
            f"C_out_p={c_out_p}, budget={budget} B); batch tiling not implemented.")
    return tn, tk, c_in_p, False


def _fused_kernel_full_k(x_ref, wt_ref, gamma_ref, beta_ref, o_ref):
    # Single reduction step: matmul + BN(training-mode batch stats) + ReLU all on
    # the in-register [N, tn] tile; exactly one store to the output block.
    y = jnp.dot(x_ref[...].astype(jnp.bfloat16), wt_ref[...],
                preferred_element_type=jnp.float32)
    mean = jnp.mean(y, axis=0, keepdims=True)
    centered = y - mean
    var = jnp.mean(centered * centered, axis=0, keepdims=True)
    scale = gamma_ref[...] * jax.lax.rsqrt(var + _BN_EPS)  # gamma folded into rsqrt
    o_ref[...] = jnp.maximum(centered * scale + beta_ref[...], 0.0)


def _fused_kernel_k_tiled(x_ref, wt_ref, gamma_ref, beta_ref, o_ref):
    # o_ref's block index is constant across the reduction axis, so it stays
    # VMEM-resident and doubles as the f32 accumulator (no scratch needed).
    k = pl.program_id(1)
    partial = jnp.dot(x_ref[...].astype(jnp.bfloat16), wt_ref[...],
                      preferred_element_type=jnp.float32)

    @pl.when(k == 0)
    def _():
        o_ref[...] = partial

    @pl.when(k > 0)
    def _():
        o_ref[...] += partial

    @pl.when(k == pl.num_programs(1) - 1)
    def _():
        y = o_ref[...]
        mean = jnp.mean(y, axis=0, keepdims=True)
        centered = y - mean
        var = jnp.mean(centered * centered, axis=0, keepdims=True)
        scale = gamma_ref[...] * jax.lax.rsqrt(var + _BN_EPS)
        o_ref[...] = jnp.maximum(centered * scale + beta_ref[...], 0.0)


def prepare_params(w_t, b, gamma, beta):
    """One-time parameter preparation (hoisted out of the per-call hot path).

    Pads the feature axis to a lane-dense multiple of 128 and casts the weight to
    bf16. `b` (the nn.Linear bias) is dropped: under training-mode BatchNorm1d
    the batch-mean subtraction cancels any per-feature constant exactly.
    NOTE: valid for training-mode BN only; eval-mode (running stats) would need
    the bias added back.
    """
    del b
    c_in, c_out = w_t.shape
    c_out_p = _round_up(c_out, _LANE)
    pad = c_out_p - c_out
    w_p = jnp.pad(w_t, ((0, 0), (0, pad))).astype(jnp.bfloat16)
    gamma_p = jnp.pad(jnp.reshape(gamma.astype(jnp.float32), (1, c_out)),
                      ((0, 0), (0, pad)))
    beta_p = jnp.pad(jnp.reshape(beta.astype(jnp.float32), (1, c_out)),
                     ((0, 0), (0, pad)))
    return w_p, gamma_p, beta_p, c_out


@functools.partial(jax.jit, static_argnames=("c_out",))
def linear_bn_act(x, w_p, gamma_p, beta_p, *, c_out):
    """x: [N, C_in]; w_p/gamma_p/beta_p from prepare_params (lane-padded)."""
    n, c_in = x.shape
    c_out_p = w_p.shape[1]

    cap = _vmem_capacity_bytes()
    budget = int(cap * 0.7)       # tile-sizing budget (compiler headroom)
    vmem_limit = int(cap * 0.8)   # scoped-VMEM limit (room for Mosaic scratch)

    num_cores = _num_tensorcores()
    tn, tk, c_in_p, x_in_f32 = _choose_tiles(n, c_in, c_out_p, budget, num_cores)
    num_j = c_out_p // tn
    num_k = c_in_p // tk
    k_tiled = num_k > 1

    if k_tiled:
        # Padding is needed anyway; pad + bf16 cast in one wrapper pass.
        x_in = x
        if c_in_p != c_in:
            x_in = jnp.pad(x_in, ((0, 0), (0, c_in_p - c_in)))
        x_in = x_in.astype(jnp.bfloat16)
        w_in = w_p if c_in_p == c_in else jnp.pad(w_p, ((0, c_in_p - c_in), (0, 0)))
    else:
        # Full-K: no K padding; optionally keep x in f32 and cast in-kernel.
        x_in = x if x_in_f32 else x.astype(jnp.bfloat16)
        w_in = w_p

    x_elem_bytes = 2 if x_in.dtype == jnp.bfloat16 else 4
    cost = pl.CostEstimate(
        flops=2 * n * c_in_p * c_out_p,
        transcendentals=c_out_p,
        bytes_accessed=(n * c_in_p * x_elem_bytes * (num_j if k_tiled else 1)
                        + c_in_p * c_out_p * 2
                        + 2 * c_out_p * 4
                        + n * c_out_p * 4),
    )

    if not k_tiled:
        grid = (num_j,)
        in_specs = [
            pl.BlockSpec((n, c_in), lambda j: (0, 0)),    # x (resident across j)
            pl.BlockSpec((c_in, tn), lambda j: (0, j)),   # W_T tile (bf16)
            pl.BlockSpec((1, tn), lambda j: (0, j)),      # bn gamma
            pl.BlockSpec((1, tn), lambda j: (0, j)),      # bn beta
        ]
        out_spec = pl.BlockSpec((n, tn), lambda j: (0, j))
        kernel = _fused_kernel_full_k
        dim_sem = ("parallel",)
    else:
        grid = (num_j, num_k)
        in_specs = [
            pl.BlockSpec((n, tk), lambda j, k: (0, k)),   # x (bf16)
            pl.BlockSpec((tk, tn), lambda j, k: (k, j),   # W_T tile, 3-deep pipeline
                         pipeline_mode=pl.Buffered(3)),
            pl.BlockSpec((1, tn), lambda j, k: (0, j)),   # bn gamma
            pl.BlockSpec((1, tn), lambda j, k: (0, j)),   # bn beta
        ]
        out_spec = pl.BlockSpec((n, tn), lambda j, k: (0, j))
        kernel = _fused_kernel_k_tiled
        dim_sem = ("parallel", "arbitrary")

    out_p = pl.pallas_call(
        kernel,
        out_shape=jax.ShapeDtypeStruct((n, c_out_p), jnp.float32),
        grid_spec=pltpu.PrefetchScalarGridSpec(
            num_scalar_prefetch=0,
            grid=grid,
            in_specs=in_specs,
            out_specs=out_spec,
        ),
        compiler_params=pltpu.CompilerParams(
            dimension_semantics=dim_sem,
            vmem_limit_bytes=vmem_limit,
        ),
        cost_estimate=cost,
    )(x_in, w_in, gamma_p, beta_p)

    # Skip the extra HBM pass when the output is already lane-dense / right dtype.
    if c_out_p != c_out:
        out_p = out_p[:, :c_out]
    if out_p.dtype != x.dtype:
        out_p = out_p.astype(x.dtype)
    return out_p


def _reference(x, w_t, b, gamma, beta):
    y = x @ w_t + b
    mean = jnp.mean(y, axis=0, keepdims=True)
    var = jnp.mean((y - mean) ** 2, axis=0, keepdims=True)
    y_hat = (y - mean) * jax.lax.rsqrt(var + _BN_EPS)
    return jnp.maximum(gamma * y_hat + beta, 0.0)


if __name__ == "__main__":
    key = jax.random.PRNGKey(0)
    k_x, k_w, k_b = jax.random.split(key, 3)

    N, C_IN, C_OUT = 8, 16, 32

    x = jax.random.normal(k_x, (N, C_IN), dtype=jnp.float32)
    # nn.Linear(in_channels, out_channels): weight [C_out, C_in]; store transposed.
    bound = 1.0 / float(C_IN) ** 0.5
    w = jax.random.uniform(k_w, (C_OUT, C_IN), jnp.float32, -bound, bound)
    w_t = jnp.transpose(w)                                   # [C_in, C_out]
    b = jax.random.uniform(k_b, (1, C_OUT), jnp.float32, -bound, bound)
    # BatchNorm1d default affine init: gamma=1, beta=0.
    gamma = jnp.ones((1, C_OUT), jnp.float32)
    beta = jnp.zeros((1, C_OUT), jnp.float32)

    # One-time parameter preparation (weight pad + bf16 cast hoisted off hot path).
    w_p, gamma_p, beta_p, c_out = prepare_params(w_t, b, gamma, beta)

    out = linear_bn_act(x, w_p, gamma_p, beta_p, c_out=c_out)
    jax.block_until_ready(out)

    # Reference evaluated on the same bf16-rounded matmul operands (f32 accumulate),
    # with the bias included to confirm it cancels under training-mode BN.
    x_q = x.astype(jnp.bfloat16).astype(jnp.float32)
    w_q = w_t.astype(jnp.bfloat16).astype(jnp.float32)
    ref = _reference(x_q, w_q, b, gamma, beta)

    assert out.shape == (N, C_OUT)
    assert bool(jnp.allclose(out, ref, atol=1e-3, rtol=1e-3)), float(
        jnp.max(jnp.abs(out - ref)))
    print("KERNEL_OK")
</pallas_src>

<mosaic_0001>
module attributes {stable_mosaic.version = 11 : i64} {
  func.func @_fused_kernel_full_k(%arg0: i32, %arg1: memref<8x16xf32, #tpu.memory_space<vmem>>, %arg2: memref<16x128xbf16, #tpu.memory_space<vmem>>, %arg3: memref<1x128xf32, #tpu.memory_space<vmem>>, %arg4: memref<1x128xf32, #tpu.memory_space<vmem>>, %arg5: memref<8x128xf32, #tpu.memory_space<vmem>>) attributes {dimension_semantics = [#tpu.dimension_semantics<parallel>], iteration_bounds = array<i64: 1>, scalar_prefetch = 0 : i64, scratch_operands = 0 : i64, tpu.core_type = #tpu.core_type<tc>, window_params = [{pipeline_mode = #tpu.pipeline_mode<synchronous>, transform_indices = @transform_0, window_bounds = array<i64: 8, 16>}, {transform_indices = @transform_1, window_bounds = array<i64: 16, 128>}, {transform_indices = @transform_2, window_bounds = array<i64: 1, 128>}, {transform_indices = @transform_3, window_bounds = array<i64: 1, 128>}, {transform_indices = @transform_4, window_bounds = array<i64: 8, 128>}]} {
    %c0 = arith.constant 0 : index
    %c0_0 = arith.constant 0 : index
    %0 = vector.load %arg1[%c0, %c0_0] : memref<8x16xf32, #tpu.memory_space<vmem>>, vector<8x16xf32>
    %1 = arith.truncf %0 : vector<8x16xf32> to vector<8x16xbf16>
    %c0_1 = arith.constant 0 : index
    %c0_2 = arith.constant 0 : index
    %2 = vector.load %arg2[%c0_1, %c0_2] : memref<16x128xbf16, #tpu.memory_space<vmem>>, vector<16x128xbf16>
    %cst = arith.constant dense<0.000000e+00> : vector<8x128xf32>
    %3 = tpu.matmul %1, %2, %cst {dimension_numbers = #tpu.dot_dimension_numbers<[1], [0], [0], [1], [0, 0, 1, 1], [], []>} : vector<8x16xbf16>, vector<16x128xbf16>, vector<8x128xf32> -> vector<8x128xf32>
    %cst_3 = arith.constant dense<0.000000e+00> : vector<128xf32>
    %4 = vector.multi_reduction <add>, %3, %cst_3 [0] : vector<8x128xf32> to vector<128xf32>
    %5 = vector.shape_cast %4 : vector<128xf32> to vector<1x128xf32>
    %cst_4 = arith.constant 8.000000e+00 : f32
    %6 = vector.broadcast %cst_4 : f32 to vector<1x128xf32>
    %7 = arith.divf %5, %6 : vector<1x128xf32>
    %8 = vector.broadcast %7 : vector<1x128xf32> to vector<8x128xf32>
    %9 = arith.subf %3, %8 : vector<8x128xf32>
    %10 = arith.mulf %9, %9 : vector<8x128xf32>
    %cst_5 = arith.constant dense<0.000000e+00> : vector<128xf32>
    %11 = vector.multi_reduction <add>, %10, %cst_5 [0] : vector<8x128xf32> to vector<128xf32>
    %12 = vector.shape_cast %11 : vector<128xf32> to vector<1x128xf32>
    %cst_6 = arith.constant 8.000000e+00 : f32
    %13 = vector.broadcast %cst_6 : f32 to vector<1x128xf32>
    %14 = arith.divf %12, %13 : vector<1x128xf32>
    %c0_7 = arith.constant 0 : index
    %c0_8 = arith.constant 0 : index
    %15 = vector.load %arg3[%c0_7, %c0_8] : memref<1x128xf32, #tpu.memory_space<vmem>>, vector<1x128xf32>
    %cst_9 = arith.constant 9.99999974E-6 : f32
    %16 = vector.broadcast %cst_9 : f32 to vector<1x128xf32>
    %17 = arith.addf %14, %16 : vector<1x128xf32>
    %18 = math.rsqrt %17 : vector<1x128xf32>
    %19 = arith.mulf %15, %18 : vector<1x128xf32>
    %20 = vector.broadcast %19 : vector<1x128xf32> to vector<8x128xf32>
    %21 = arith.mulf %9, %20 : vector<8x128xf32>
    %c0_10 = arith.constant 0 : index
    %c0_11 = arith.constant 0 : index
    %22 = vector.load %arg4[%c0_10, %c0_11] : memref<1x128xf32, #tpu.memory_space<vmem>>, vector<1x128xf32>
    %23 = vector.broadcast %22 : vector<1x128xf32> to vector<8x128xf32>
    %24 = arith.addf %21, %23 : vector<8x128xf32>
    %cst_12 = arith.constant 0.000000e+00 : f32
    %25 = vector.broadcast %cst_12 : f32 to vector<8x128xf32>
    %26 = arith.maximumf %24, %25 : vector<8x128xf32>
    %c0_13 = arith.constant 0 : index
    %c0_14 = arith.constant 0 : index
    %27 = vector.load %arg5[%c0_13, %c0_14] : memref<8x128xf32, #tpu.memory_space<vmem>>, vector<8x128xf32>
    tpu.vector_store %arg5[%c0_13, %c0_14], %26 {strides = array<i32>} : memref<8x128xf32, #tpu.memory_space<vmem>>, vector<8x128xf32>,
    return
  }
  func.func @transform_0(%arg0: i32) -> (i32, i32) {
    %c0_i32 = arith.constant 0 : i32
    %c0_i32_0 = arith.constant 0 : i32
    %c0_i32_1 = arith.constant 0 : i32
    return %c0_i32, %c0_i32_0 : i32, i32
  }
  func.func @transform_1(%arg0: i32) -> (i32, i32) {
    %c0_i32 = arith.constant 0 : i32
    %c0_i32_0 = arith.constant 0 : i32
    return %c0_i32, %arg0 : i32, i32
  }
  func.func @transform_2(%arg0: i32) -> (i32, i32) {
    %c0_i32 = arith.constant 0 : i32
    %c0_i32_0 = arith.constant 0 : i32
    return %c0_i32, %arg0 : i32, i32
  }
  func.func @transform_3(%arg0: i32) -> (i32, i32) {
    %c0_i32 = arith.constant 0 : i32
    %c0_i32_0 = arith.constant 0 : i32
    return %c0_i32, %arg0 : i32, i32
  }
  func.func @transform_4(%arg0: i32) -> (i32, i32) {
    %c0_i32 = arith.constant 0 : i32
    %c0_i32_0 = arith.constant 0 : i32
    return %c0_i32, %arg0 : i32, i32
  }
}

</mosaic_0001>

<llo_original>
// kernel: linear_bn_act.1
$region0: #{linear_bn_act.1}
  #allocation0 [shape = 'u32[]', space=smem, size = 0x4, offset = 0x4, fixed_abs, tag = 'smem constant byte address 0x4 - core index']
  #allocation1 [shape = 'u32[144,128]{1,0:T(1,128)}', space=vmem, size = 0x12000, scoped, tag = 'internal scratch']
  %s0 = inlined_call_operand.hbm [shape: f32[8,16], index: 0, kind: input, shape index: {}]
  %s1 = inlined_call_operand.hbm [shape: bf16[16,128], index: 1, kind: input, shape index: {}]
  %s2 = inlined_call_operand.vmem [shape: f32[1,128], index: 2, kind: input, shape index: {}]
  %s3 = inlined_call_operand.vmem [shape: f32[1,128], index: 3, kind: input, shape index: {}]
  %s4 = inlined_call_operand.hbm [shape: f32[8,128], index: 4, kind: output, shape index: {}]
  %s5 = sld [smem:[#allocation0]]
  $region34: #{linear_bn_act.1} parent=0
    _
  %s7 = ssub.s32 1, %s5
  %s8 = scalar_select 0, %s7, %s5
  $region1: #{linear_bn_act.1} parent=0
    #allocation2 [shape = 'u8[4096]{0}', space=vmem, size = 0x1000, scoped, tag = 'input window, operand 0, single buffered']
    #allocation3 [shape = 's32[1]{0}', space=sflag, size = 0x4, scoped, tag = 'scoped memory for linear_bn_act.1']
    #allocation4 [shape = 's32[1]{0}', space=sflag, size = 0x4, scoped, tag = 'scoped memory for linear_bn_act.1']
    #allocation5 [shape = 'u8[4096]{0}', space=vmem, size = 0x1000, scoped, tag = 'input window, operand 1, single buffered']
    #allocation6 [shape = 's32[1]{0}', space=sflag, size = 0x4, scoped, tag = 'scoped memory for linear_bn_act.1']
    #allocation7 [shape = 'u8[4096]{0}', space=vmem, size = 0x1000, scoped, tag = 'output window, operand 0, single buffered']
    %9 = vsyncpa [#allocation3], 0
    %10 = vsyncpa [#allocation6], 0
    %11 = vsyncpa [#allocation4], 0
    // Predicated region
    $region2: #{linear_bn_act.1} parent=1 // pred_check
      _
    $region3: #{linear_bn_act.1} parent=1 // pred_check_branch
      %13 = sbr.rel (0) target = $region5
    $region4: #{linear_bn_act.1} parent=1 // pred_region
      %s15 = ssub.s32 128, 128
      %16 = vsyncadd [#allocation3], %s15
      %s18 = sshll.u32 [#allocation2], 4
      %s19 = int_to_ptr.vmem [resolvable:$true] %s18
      %21 = dma.hbm_to_vmem [thread:$0]  %s0, 128, %s19, [#allocation3]
    $region5: #{linear_bn_act.1} parent=1 // pred_fallthru
      _
    // Predicated region
    $region6: #{linear_bn_act.1} parent=1 // pred_check
      _
    $region7: #{linear_bn_act.1} parent=1 // pred_check_branch
      %23 = sbr.rel (0) target = $region9
    $region8: #{linear_bn_act.1} parent=1 // pred_region
      %s25 = ssub.s32 128, 128
      %26 = vsyncadd [#allocation6], %s25
      %s27 = sshll.u32 [#allocation5], 4
      %s28 = int_to_ptr.vmem [resolvable:$true] %s27
      %33 = dma.hbm_to_vmem [thread:$0]  %s1, 128, %s28, [#allocation6], 64, 64, 4
    $region9: #{linear_bn_act.1} parent=1 // pred_fallthru
      _
    // Predicated region
    $region10: #{linear_bn_act.1} parent=1 // pred_check
      _
    $region11: #{linear_bn_act.1} parent=1 // pred_check_branch
      %35 = sbr.rel (0) target = $region13
    $region12: #{linear_bn_act.1} parent=1 // pred_region
      _
    $region13: #{linear_bn_act.1} parent=1 // pred_fallthru
      _
    // Predicated region
    $region14: #{linear_bn_act.1} parent=1 // pred_check
      _
    $region15: #{linear_bn_act.1} parent=1 // pred_check_branch
      %37 = sbr.rel (0) target = $region17
    $region16: #{linear_bn_act.1} parent=1 // pred_region
      _
    $region17: #{linear_bn_act.1} parent=1 // pred_fallthru
      _
    // Predicated region
    $region18: #{linear_bn_act.1} parent=1 // pred_check
      _
    $region19: #{linear_bn_act.1} parent=1 // pred_check_branch
      %39 = sbr.rel (0) target = $region21
    $region20: #{linear_bn_act.1} parent=1 // pred_region
      %40 = dma.done [#allocation3], 128
    $region21: #{linear_bn_act.1} parent=1 // pred_fallthru
      _
    // Predicated region
    $region22: #{linear_bn_act.1} parent=1 // pred_check
      _
    $region23: #{linear_bn_act.1} parent=1 // pred_check_branch
      %42 = sbr.rel (0) target = $region25
    $region24: #{linear_bn_act.1} parent=1 // pred_region
      %43 = dma.done [#allocation6], 128
    $region25: #{linear_bn_act.1} parent=1 // pred_fallthru
      _
    %v45 = vld [vmem:[#allocation2] sm:$0xff]
    %v46 = vpack.c.bf16 %v45, %v45
    %v47 = vld [vmem:[#allocation5] sm:$0xf]
    %v48 = vld [vmem:[#allocation5 + $0x4] sm:$0xf]
    %v51 = vunpack.c.l.b16 %v47
    %v52 = vunpack.c.l.b16 %v48
    %v53 = vpack.c.b16 %v52, %v51
    %vm55 = vcmask 130048
    %v57 = vsel %vm55, %v46, 0
    %59 = vmatprep.subr.bf16.mxu0 0
    %60 = vmatpush1.bf16.msra.mxu0 %v53
    %61 = vmatprep.subr.bf16.mxu0 0
    %62 = vmatpush1.bf16.msra.mxu0 0
    %63 = vmatprep.subr.bf16.mxu0 0
    %64 = vmatpush1.bf16.msra.mxu0 0
    %65 = vmatprep.subr.bf16.mxu0 0
    %66 = vmatpush1.bf16.msra.mxu0 0
    %67 = vmatprep.subr.bf16.mxu0 0
    %68 = vmatpush1.bf16.msra.mxu0 0
    %69 = vmatprep.subr.bf16.mxu0 0
    %70 = vmatpush1.bf16.msra.mxu0 0
    %71 = vmatprep.subr.bf16.mxu0 0
    %72 = vmatpush1.bf16.msra.mxu0 0
    %73 = vmatprep.subr.bf16.mxu0 0
    %74 = vmatpush1.bf16.msra.mxu0 0
    %75 = vmatprep.subr.bf16.mxu0 0
    %76 = vmatpush1.bf16.msra.mxu0 0
    %77 = vmatprep.subr.bf16.mxu0 0
    %78 = vmatpush1.bf16.msra.mxu0 0
    %79 = vmatprep.subr.bf16.mxu0 0
    %80 = vmatpush1.bf16.msra.mxu0 0
    %81 = vmatprep.subr.bf16.mxu0 0
    %82 = vmatpush1.bf16.msra.mxu0 0
    %83 = vmatprep.subr.bf16.mxu0 0
    %84 = vmatpush1.bf16.msra.mxu0 0
    %85 = vmatprep.subr.bf16.mxu0 0
    %86 = vmatpush1.bf16.msra.mxu0 0
    %87 = vmatprep.subr.bf16.mxu0 0
    %88 = vmatpush1.bf16.msra.mxu0 0
    %89 = vmatprep.subr.bf16.mxu0 0
    %90 = vmatpush1.bf16.msra.mxu0 0
    %91 = vmatprep.mubr.bf16.mxu0 0
    %92 = vmatmul.mubr.bf16.gmra.mrb[0].mxu0 %v57
    %v93 = vpop.f32.mrb[0].mxu0
    %v94 = vadd.f32 0.0, %v93
    %v95 = vpop.f32.mrb[0].mxu0
    %v96 = vpop.f32.mrb[0].mxu0
    %v97 = vpop.f32.mrb[0].mxu0
    %98 = vdwg.mxu0
    %v99 = vrot.slane %v94, 4
    %v100 = vadd.f32 %v94, %v99
    %v101 = vrot.slane %v100, 2
    %v102 = vadd.f32 %v100, %v101
    %v103 = vrot.slane %v102, 1
    %v104 = vadd.f32 %v102, %v103
    %v105 = vrcp.pop 8.0
    %v106 = vmul.f32 %v104, %v105
    %v107 = vsub.f32 %v94, %v106
    %v108 = vmul.f32 %v107, %v107
    %v109 = vrot.slane %v108, 4
    %v110 = vadd.f32 %v108, %v109
    %v111 = vrot.slane %v110, 2
    %v112 = vadd.f32 %v110, %v111
    %v113 = vrot.slane %v112, 1
    %v114 = vadd.f32 %v112, %v113
    %v115 = vmul.f32 %v114, %v105
    %v116 = vld [vmem:[%s2] sm:$0x1]
    %v117 = vadd.f32 %v115, 1e-05
    %v118 = vrsqrt.pop %v117
    %v119 = vmul.f32 %v116, %v118
    %v121 = vlaneseq
    %v122 = vshrl.u32 %v121, 7
    %v123 = vsub.s32 0, %v122
    %v124 = vrot.slane %v119, %v123
    %v126 = vmul.f32 %v107, %v124
    %v127 = vld [vmem:[%s3] sm:$0x1]
    %v129 = vlaneseq
    %v130 = vshrl.u32 %v129, 7
    %v131 = vsub.s32 0, %v130
    %v132 = vrot.slane %v127, %v131
    %v134 = vadd.f32 %v126, %v132
    %v135 = vmax.f32 %v134, 0.0
    %136 = vst [vmem:[#allocation7] sm:$0xff] %v135
    // Predicated region
    $region26: #{linear_bn_act.1} parent=1 // pred_check
      _
    $region27: #{linear_bn_act.1} parent=1 // pred_check_branch
      %138 = sbr.rel (0) target = $region29
    $region28: #{linear_bn_act.1} parent=1 // pred_region
      %s140 = ssub.s32 128, 128
      %141 = vsyncadd [#allocation4], %s140
      %s143 = sshll.u32 [#allocation7], 4
      %s144 = int_to_ptr.vmem [resolvable:$true] %s143
      %146 = dma.vmem_to_hbm [thread:$0]  %s144, 128, %s4, [#allocation4]
    $region29: #{linear_bn_act.1} parent=1 // pred_fallthru
      _
    // Predicated region
    $region30: #{linear_bn_act.1} parent=1 // pred_check
      _
    $region31: #{linear_bn_act.1} parent=1 // pred_check_branch
      %148 = sbr.rel (0) target = $region33
    $region32: #{linear_bn_act.1} parent=1 // pred_region
      %149 = dma.done [#allocation4], 128
    $region33: #{linear_bn_act.1} parent=1 // pred_fallthru
      _
    %150 = vsyncpa [#allocation3], 1
    %151 = vsyncpa [#allocation6], 1
    %152 = vsyncpa [#allocation4], 1

</llo_original>
